<compile_context>
chip_gen: v5e
topology: v5e:2x2
jax: 0.10.0
libtpu: 0.0.40
codegen_flags: <defaults>
</compile_context>

<pallas_src>
import math
from functools import partial

import jax
import jax.numpy as jnp
from jax.experimental import pallas as pl
from jax.experimental.pallas import tpu as pltpu

LN_EPS = 1e-5  # nn.LayerNorm default eps


def _round_up(n, m):
    return ((n + m - 1) // m) * m


def _pad_to(a, target, axis):
    pad = target - a.shape[axis]
    if pad == 0:
        return a
    widths = [(0, 0)] * a.ndim
    widths[axis] = (0, pad)
    return jnp.pad(a, widths)


def _pick_tile(total, cap):
    """Largest multiple of 128 that divides `total` (a multiple of 128) and is <= cap."""
    for t in range(min(cap, total), 127, -128):
        if total % t == 0:
            return t
    return 128


def mlp_kernel(x_ref, w1_ref, w2_ref, sc_ref, o_ref, y_ref, *, inv_d, tn):
    """One (batch tile i, fc2-output tile j) grid step.

    sc_ref rows: 0 = b1, 1 = b2, 2 = LN gamma, 3 = LN beta (f32, lane-padded).
    y_ref: (TB, DoutP) f32 scratch holding the post-LN activation for the
    current batch tile; written at j == 0, reused for every j.
    """
    j = pl.program_id(1)

    @pl.when(j == 0)
    def _():
        # fc1: lane-dense (M,K)x(K,N) MXU push with f32 accumulation, + bias.
        xb = x_ref[...].astype(w1_ref.dtype)
        h = jnp.dot(xb, w1_ref[...], preferred_element_type=jnp.float32)
        h = h + sc_ref[0:1, :]
        # LayerNorm over the real Dout features.  Padded lanes of h are exactly
        # zero (w1 columns and b1 are zero-padded), so no mask is needed: the
        # sums only pick up valid lanes, and zero-padded gamma/beta re-zero the
        # padded lanes of y.
        mean = jnp.sum(h, axis=-1, keepdims=True) * inv_d
        mean_sq = jnp.sum(h * h, axis=-1, keepdims=True) * inv_d
        var = jnp.maximum(mean_sq - mean * mean, 0.0)
        y_ref[...] = ((h - mean) * jax.lax.rsqrt(var + LN_EPS) * sc_ref[2:3, :]
                      + sc_ref[3:4, :])

    # fc2 on the streamed (DoutP, TN) weight block + bias + residual (post-LN y).
    off = pl.multiple_of(j * tn, 128)
    out = jnp.dot(y_ref[...].astype(w2_ref.dtype), w2_ref[...],
                  preferred_element_type=jnp.float32)
    out = out + sc_ref[1:2, pl.ds(off, tn)] + y_ref[:, pl.ds(off, tn)]
    o_ref[...] = out.astype(o_ref.dtype)


def prepare_params(w1, b1, w2, b2, gamma, beta, *, mxu_dtype=jnp.bfloat16):
    """One-time packing of the PyTorch-layout parameters.

    * Feature dims zero-padded to multiples of 128 lanes (lane-dense MXU / vst).
    * w1 / w2 stored pre-transposed as (DinP, DoutP) / (DoutP, DoutP).
    * w1 / w2 cast to `mxu_dtype` (bf16 by default; pass None for exact f32).
    * b1 / b2 / gamma / beta packed into one resident (8, DoutP) f32 array.
    """
    dout, din = w1.shape
    din_p = _round_up(max(din, 128), 128)
    dout_p = _round_up(max(dout, 128), 128)
    if mxu_dtype is None:
        mxu_dtype = w1.dtype
    w1_t = _pad_to(_pad_to(jnp.asarray(w1).T, din_p, 0), dout_p, 1).astype(mxu_dtype)
    w2_t = _pad_to(_pad_to(jnp.asarray(w2).T, dout_p, 0), dout_p, 1).astype(mxu_dtype)
    scales = jnp.stack([b1, b2, gamma, beta]).astype(jnp.float32)   # (4, Dout)
    scales = _pad_to(_pad_to(scales, 8, 0), dout_p, 1)              # (8, DoutP)
    return {"w1": w1_t, "w2": w2_t, "scales": scales,
            "din": din, "dout": dout, "din_p": din_p, "dout_p": dout_p}


def mlp_forward(x, params, *, tb=512, tn_cap=1024):
    """x: (B, in_features) -> (B, out_features); params from prepare_params.

    tb: batch-tile cap (rows per grid step).  512 hits ~85% of HBM roofline on
        v6e/v5e; lower it if VMEM-constrained.
    tn_cap: cap on the fc2 output-feature tile so the streamed (DoutP, TN) w2
        block stays small enough for v7x's 64 MiB per-TC VMEM at large Dout.
    """
    B, din = x.shape
    assert din == params["din"]
    din_p, dout_p, dout = params["din_p"], params["dout_p"], params["dout"]

    # Batch tile: multiple of 8 sublanes, capped at tb.  Prefer >= 2 batch grid
    # steps so v7x can shard the parallel axis over both TensorCores.
    TB = min(tb, _round_up(B, 8))
    if B >= 16 and pl.cdiv(B, TB) < 2:
        TB = _round_up(pl.cdiv(B, 2), 8)
    Bp = _round_up(B, TB)
    nb = Bp // TB

    TN = _pick_tile(dout_p, tn_cap)
    nj = dout_p // TN

    # Skip the pad entirely when the caller already supplies the padded layout.
    x_p = x if x.shape == (Bp, din_p) else _pad_to(_pad_to(x, Bp, 0), din_p, 1)

    w_esz = jnp.dtype(params["w1"].dtype).itemsize
    x_esz = jnp.dtype(x.dtype).itemsize
    cost = pl.CostEstimate(
        flops=2 * Bp * din_p * dout_p + 2 * Bp * dout_p * dout_p,
        transcendentals=Bp,   # one rsqrt per row
        bytes_accessed=(Bp * din_p * x_esz
                        + (din_p * dout_p + dout_p * dout_p) * w_esz
                        + 8 * dout_p * 4
                        + Bp * dout_p * x_esz),
    )

    # Explicit VMEM budget (scoped defaults: 16 MiB v5e, 32 MiB v6e/v7x).
    # Budget conservatively assumes double-buffering everywhere even though the
    # resident blocks request Buffered(1).
    vmem_need = (2 * din_p * dout_p * w_esz          # w1
                 + 2 * dout_p * TN * w_esz           # w2 block
                 + 2 * 8 * dout_p * 4                # packed scales
                 + 2 * TB * din_p * x_esz            # x block
                 + 2 * TB * TN * x_esz               # out block
                 + 3 * TB * dout_p * 4)              # y scratch + h temporaries
    vmem_limit = int(min(max(vmem_need + (4 << 20), 32 << 20), 128 << 20))

    # TODO(synk): for very large in_features, also stream w1 over a K grid axis
    # (accumulator scratch) instead of keeping the full (DinP, DoutP) resident.

    kernel = partial(mlp_kernel, inv_d=1.0 / dout, tn=TN)

    def build_call(single_buffer_resident):
        def spec(shape, index_map, resident=False):
            if single_buffer_resident and resident:
                # Constant index_map => no double-buffering needed; halves the
                # resident VMEM footprint (matters on v7x's 64 MiB per TC).
                return pl.BlockSpec(shape, index_map, pipeline_mode=pl.Buffered(1))
            return pl.BlockSpec(shape, index_map)

        return pl.pallas_call(
            kernel,
            out_shape=jax.ShapeDtypeStruct((Bp, dout_p), x.dtype),
            grid=(nb, nj),
            in_specs=[
                spec((TB, din_p), lambda i, j: (i, 0)),                        # x
                spec((din_p, dout_p), lambda i, j: (0, 0), resident=True),     # w1
                spec((dout_p, TN), lambda i, j: (0, j), resident=(nj == 1)),   # w2
                spec((8, dout_p), lambda i, j: (0, 0), resident=True),         # b1/b2/g/beta
            ],
            out_specs=pl.BlockSpec((TB, TN), lambda i, j: (i, j)),
            scratch_shapes=[pltpu.VMEM((TB, dout_p), jnp.float32)],
            compiler_params=pltpu.CompilerParams(
                dimension_semantics=("parallel", "arbitrary"),
                vmem_limit_bytes=vmem_limit,
            ),
            cost_estimate=cost,
        )

    try:
        out_p = build_call(True)(x_p, params["w1"], params["w2"], params["scales"])
    except Exception:
        # Fallback for jax versions whose pipeliner rejects single-buffered
        # resident blocks; kernel semantics are identical.
        out_p = build_call(False)(x_p, params["w1"], params["w2"], params["scales"])

    if (Bp, dout_p) == (B, dout):
        return out_p
    return out_p[:B, :dout]


if __name__ == "__main__":
    # Small shapes consistent with the module: cfg.in_features=32, cfg.out_features=32.
    B, D_IN, D_OUT = 8, 32, 32

    key = jax.random.PRNGKey(0)
    kx, kw1, kb1, kw2, kb2 = jax.random.split(key, 5)

    x = jax.random.normal(kx, (B, D_IN), dtype=jnp.float32)

    # nn.Linear-style uniform init; nn.LayerNorm defaults (gamma=1, beta=0).
    lim1 = 1.0 / math.sqrt(D_IN)
    w1 = jax.random.uniform(kw1, (D_OUT, D_IN), minval=-lim1, maxval=lim1, dtype=jnp.float32)
    b1 = jax.random.uniform(kb1, (D_OUT,), minval=-lim1, maxval=lim1, dtype=jnp.float32)
    lim2 = 1.0 / math.sqrt(D_OUT)
    w2 = jax.random.uniform(kw2, (D_OUT, D_OUT), minval=-lim2, maxval=lim2, dtype=jnp.float32)
    b2 = jax.random.uniform(kb2, (D_OUT,), minval=-lim2, maxval=lim2, dtype=jnp.float32)
    gamma = jnp.ones((D_OUT,), dtype=jnp.float32)
    beta = jnp.zeros((D_OUT,), dtype=jnp.float32)

    # Pure-JAX reference:  y = LN(fc1(x)); out = fc2(y) + y   (residual is post-LN y).
    h = x @ w1.T + b1
    mu = h.mean(-1, keepdims=True)
    va = ((h - mu) ** 2).mean(-1, keepdims=True)
    y = (h - mu) / jnp.sqrt(va + LN_EPS) * gamma + beta
    ref = y @ w2.T + b2 + y

    # 1) Exact-dtype path (f32 MXU operands) -> tight tolerance.
    params_f32 = prepare_params(w1, b1, w2, b2, gamma, beta, mxu_dtype=None)
    out_f32 = mlp_forward(x, params_f32)
    jax.block_until_ready(out_f32)
    assert out_f32.shape == (B, D_OUT)
    assert jnp.allclose(out_f32, ref, atol=1e-4, rtol=1e-4), "f32 mismatch vs reference"

    # 2) Default bf16-MXU path (f32 accumulation + f32 LN) -> bf16-level tolerance.
    params_bf16 = prepare_params(w1, b1, w2, b2, gamma, beta)
    out_bf16 = mlp_forward(x, params_bf16)
    jax.block_until_ready(out_bf16)
    assert jnp.allclose(out_bf16, ref, atol=5e-2, rtol=5e-2), "bf16 mismatch vs reference"

    print("KERNEL_OK")
</pallas_src>

<mosaic_0001>
module attributes {stable_mosaic.version = 11 : i64} {
  func.func @mlp_kernel(%arg0: i32, %arg1: i32, %arg2: memref<8x128xf32, #tpu.memory_space<vmem>>, %arg3: memref<128x128xf32, #tpu.memory_space<vmem>>, %arg4: memref<128x128xf32, #tpu.memory_space<vmem>>, %arg5: memref<8x128xf32, #tpu.memory_space<vmem>>, %arg6: memref<8x128xf32, #tpu.memory_space<vmem>>, %arg7: memref<8x128xf32, #tpu.memory_space<vmem>>) attributes {dimension_semantics = [#tpu.dimension_semantics<parallel>, #tpu.dimension_semantics<arbitrary>], iteration_bounds = array<i64: 1, 1>, scalar_prefetch = 0 : i64, scratch_operands = 1 : i64, tpu.core_type = #tpu.core_type<tc>, window_params = [{transform_indices = @transform_0, window_bounds = array<i64: 8, 128>}, {pipeline_mode = #tpu.pipeline_mode<synchronous>, transform_indices = @transform_1, window_bounds = array<i64: 128, 128>}, {pipeline_mode = #tpu.pipeline_mode<synchronous>, transform_indices = @transform_2, window_bounds = array<i64: 128, 128>}, {pipeline_mode = #tpu.pipeline_mode<synchronous>, transform_indices = @transform_3, window_bounds = array<i64: 8, 128>}, {transform_indices = @transform_4, window_bounds = array<i64: 8, 128>}]} {
    %c0_i32 = arith.constant 0 : i32
    %0 = arith.cmpi eq, %arg1, %c0_i32 : i32
    %1 = arith.extui %0 : i1 to i32
    %c0_i32_0 = arith.constant 0 : i32
    %2 = arith.cmpi ne, %1, %c0_i32_0 : i32
    scf.if %2 {
      %c0_7 = arith.constant 0 : index
      %c0_8 = arith.constant 0 : index
      %16 = vector.load %arg2[%c0_7, %c0_8] : memref<8x128xf32, #tpu.memory_space<vmem>>, vector<8x128xf32>
      %c0_9 = arith.constant 0 : index
      %c0_10 = arith.constant 0 : index
      %17 = vector.load %arg3[%c0_9, %c0_10] : memref<128x128xf32, #tpu.memory_space<vmem>>, vector<128x128xf32>
      %cst_11 = arith.constant dense<0.000000e+00> : vector<8x128xf32>
      %18 = tpu.matmul %16, %17, %cst_11 {dimension_numbers = #tpu.dot_dimension_numbers<[1], [0], [0], [1], [0, 0, 1, 1], [], []>} : vector<8x128xf32>, vector<128x128xf32>, vector<8x128xf32> -> vector<8x128xf32>
      %c0_12 = arith.constant 0 : index
      %c0_13 = arith.constant 0 : index
      %19 = vector.load %arg5[%c0_12, %c0_13] : memref<8x128xf32, #tpu.memory_space<vmem>>, vector<1x128xf32>
      %20 = vector.broadcast %19 : vector<1x128xf32> to vector<8x128xf32>
      %21 = arith.addf %18, %20 : vector<8x128xf32>
      %cst_14 = arith.constant dense<0.000000e+00> : vector<8xf32>
      %22 = vector.multi_reduction <add>, %21, %cst_14 [1] : vector<8x128xf32> to vector<8xf32>
      %23 = vector.shape_cast %22 : vector<8xf32> to vector<8x1xf32>
      %cst_15 = arith.constant 3.125000e-02 : f32
      %24 = vector.broadcast %cst_15 : f32 to vector<8x1xf32>
      %25 = arith.mulf %23, %24 : vector<8x1xf32>
      %26 = arith.mulf %21, %21 : vector<8x128xf32>
      %cst_16 = arith.constant dense<0.000000e+00> : vector<8xf32>
      %27 = vector.multi_reduction <add>, %26, %cst_16 [1] : vector<8x128xf32> to vector<8xf32>
      %28 = vector.shape_cast %27 : vector<8xf32> to vector<8x1xf32>
      %cst_17 = arith.constant 3.125000e-02 : f32
      %29 = vector.broadcast %cst_17 : f32 to vector<8x1xf32>
      %30 = arith.mulf %28, %29 : vector<8x1xf32>
      %31 = arith.mulf %25, %25 : vector<8x1xf32>
      %32 = arith.subf %30, %31 : vector<8x1xf32>
      %cst_18 = arith.constant 0.000000e+00 : f32
      %33 = vector.broadcast %cst_18 : f32 to vector<8x1xf32>
      %34 = arith.maximumf %32, %33 : vector<8x1xf32>
      %35 = vector.broadcast %25 : vector<8x1xf32> to vector<8x128xf32>
      %36 = arith.subf %21, %35 : vector<8x128xf32>
      %cst_19 = arith.constant 9.99999974E-6 : f32
      %37 = vector.broadcast %cst_19 : f32 to vector<8x1xf32>
      %38 = arith.addf %34, %37 : vector<8x1xf32>
      %39 = math.rsqrt %38 : vector<8x1xf32>
      %40 = vector.broadcast %39 : vector<8x1xf32> to vector<8x128xf32>
      %41 = arith.mulf %36, %40 : vector<8x128xf32>
      %c2 = arith.constant 2 : index
      %c0_20 = arith.constant 0 : index
      %42 = vector.load %arg5[%c2, %c0_20] : memref<8x128xf32, #tpu.memory_space<vmem>>, vector<1x128xf32>
      %43 = vector.broadcast %42 : vector<1x128xf32> to vector<8x128xf32>
      %44 = arith.mulf %41, %43 : vector<8x128xf32>
      %c3 = arith.constant 3 : index
      %c0_21 = arith.constant 0 : index
      %45 = vector.load %arg5[%c3, %c0_21] : memref<8x128xf32, #tpu.memory_space<vmem>>, vector<1x128xf32>
      %46 = vector.broadcast %45 : vector<1x128xf32> to vector<8x128xf32>
      %47 = arith.addf %44, %46 : vector<8x128xf32>
      %c0_22 = arith.constant 0 : index
      %c0_23 = arith.constant 0 : index
      %48 = vector.load %arg7[%c0_22, %c0_23] : memref<8x128xf32, #tpu.memory_space<vmem>>, vector<8x128xf32>
      tpu.vector_store %arg7[%c0_22, %c0_23], %47 {strides = array<i32>} : memref<8x128xf32, #tpu.memory_space<vmem>>, vector<8x128xf32>,
    } else {
    }
    %c128_i32 = arith.constant 128 : i32
    %3 = arith.muli %arg1, %c128_i32 : i32
    %4 = tpu.assume_multiple %3, 128 : i32
    %c0 = arith.constant 0 : index
    %c0_1 = arith.constant 0 : index
    %5 = vector.load %arg7[%c0, %c0_1] : memref<8x128xf32, #tpu.memory_space<vmem>>, vector<8x128xf32>
    %c0_2 = arith.constant 0 : index
    %c0_3 = arith.constant 0 : index
    %6 = vector.load %arg4[%c0_2, %c0_3] : memref<128x128xf32, #tpu.memory_space<vmem>>, vector<128x128xf32>
    %cst = arith.constant dense<0.000000e+00> : vector<8x128xf32>
    %7 = tpu.matmul %5, %6, %cst {dimension_numbers = #tpu.dot_dimension_numbers<[1], [0], [0], [1], [0, 0, 1, 1], [], []>} : vector<8x128xf32>, vector<128x128xf32>, vector<8x128xf32> -> vector<8x128xf32>
    %c1 = arith.constant 1 : index
    %8 = arith.index_cast %4 : i32 to index
    %9 = vector.load %arg5[%c1, %8] : memref<8x128xf32, #tpu.memory_space<vmem>>, vector<1x128xf32>
    %10 = vector.broadcast %9 : vector<1x128xf32> to vector<8x128xf32>
    %11 = arith.addf %7, %10 : vector<8x128xf32>
    %c0_4 = arith.constant 0 : index
    %12 = arith.index_cast %4 : i32 to index
    %13 = vector.load %arg7[%c0_4, %12] : memref<8x128xf32, #tpu.memory_space<vmem>>, vector<8x128xf32>
    %14 = arith.addf %11, %13 : vector<8x128xf32>
    %c0_5 = arith.constant 0 : index
    %c0_6 = arith.constant 0 : index
    %15 = vector.load %arg6[%c0_5, %c0_6] : memref<8x128xf32, #tpu.memory_space<vmem>>, vector<8x128xf32>
    tpu.vector_store %arg6[%c0_5, %c0_6], %14 {strides = array<i32>} : memref<8x128xf32, #tpu.memory_space<vmem>>, vector<8x128xf32>,
    return
  }
  func.func @transform_0(%arg0: i32, %arg1: i32) -> (i32, i32) {
    %c0_i32 = arith.constant 0 : i32
    %c0_i32_0 = arith.constant 0 : i32
    return %arg0, %c0_i32 : i32, i32
  }
  func.func @transform_1(%arg0: i32, %arg1: i32) -> (i32, i32) {
    %c0_i32 = arith.constant 0 : i32
    %c0_i32_0 = arith.constant 0 : i32
    %c0_i32_1 = arith.constant 0 : i32
    return %c0_i32, %c0_i32_0 : i32, i32
  }
  func.func @transform_2(%arg0: i32, %arg1: i32) -> (i32, i32) {
    %c0_i32 = arith.constant 0 : i32
    %c0_i32_0 = arith.constant 0 : i32
    return %c0_i32, %arg1 : i32, i32
  }
  func.func @transform_3(%arg0: i32, %arg1: i32) -> (i32, i32) {
    %c0_i32 = arith.constant 0 : i32
    %c0_i32_0 = arith.constant 0 : i32
    %c0_i32_1 = arith.constant 0 : i32
    return %c0_i32, %c0_i32_0 : i32, i32
  }
  func.func @transform_4(%arg0: i32, %arg1: i32) -> (i32, i32) {
    %c0_i32 = arith.constant 0 : i32
    return %arg0, %arg1 : i32, i32
  }
}

module attributes {stable_mosaic.version = 11 : i64} {
  func.func @mlp_kernel(%arg0: i32, %arg1: i32, %arg2: memref<8x128xf32, #tpu.memory_space<vmem>>, %arg3: memref<128x128xf32, #tpu.memory_space<vmem>>, %arg4: memref<128x128xf32, #tpu.memory_space<vmem>>, %arg5: memref<8x128xf32, #tpu.memory_space<vmem>>, %arg6: memref<8x128xf32, #tpu.memory_space<vmem>>, %arg7: memref<8x128xf32, #tpu.memory_space<vmem>>) attributes {dimension_semantics = [#tpu.dimension_semantics<parallel>, #tpu.dimension_semantics<arbitrary>], iteration_bounds = array<i64: 1, 1>, scalar_prefetch = 0 : i64, scratch_operands = 1 : i64, tpu.core_type = #tpu.core_type<tc>, window_params = [{transform_indices = @transform_0, window_bounds = array<i64: 8, 128>}, {pipeline_mode = #tpu.pipeline_mode<synchronous>, transform_indices = @transform_1, window_bounds = array<i64: 128, 128>}, {transform_indices = @transform_2, window_bounds = array<i64: 128, 128>}, {pipeline_mode = #tpu.pipeline_mode<synchronous>, transform_indices = @transform_3, window_bounds = array<i64: 8, 128>}, {transform_indices = @transform_4, window_bounds = array<i64: 8, 128>}]} {
    %c0_i32 = arith.constant 0 : i32
    %0 = arith.cmpi eq, %arg1, %c0_i32 : i32
    %1 = arith.extui %0 : i1 to i32
    %c0_i32_0 = arith.constant 0 : i32
    %2 = arith.cmpi ne, %1, %c0_i32_0 : i32
    scf.if %2 {
      %c0_7 = arith.constant 0 : index
      %c0_8 = arith.constant 0 : index
      %16 = vector.load %arg2[%c0_7, %c0_8] : memref<8x128xf32, #tpu.memory_space<vmem>>, vector<8x128xf32>
      %c0_9 = arith.constant 0 : index
      %c0_10 = arith.constant 0 : index
      %17 = vector.load %arg3[%c0_9, %c0_10] : memref<128x128xf32, #tpu.memory_space<vmem>>, vector<128x128xf32>
      %cst_11 = arith.constant dense<0.000000e+00> : vector<8x128xf32>
      %18 = tpu.matmul %16, %17, %cst_11 {dimension_numbers = #tpu.dot_dimension_numbers<[1], [0], [0], [1], [0, 0, 1, 1], [], []>} : vector<8x128xf32>, vector<128x128xf32>, vector<8x128xf32> -> vector<8x128xf32>
      %c0_12 = arith.constant 0 : index
      %c0_13 = arith.constant 0 : index
      %19 = vector.load %arg5[%c0_12, %c0_13] : memref<8x128xf32, #tpu.memory_space<vmem>>, vector<1x128xf32>
      %20 = vector.broadcast %19 : vector<1x128xf32> to vector<8x128xf32>
      %21 = arith.addf %18, %20 : vector<8x128xf32>
      %cst_14 = arith.constant dense<0.000000e+00> : vector<8xf32>
      %22 = vector.multi_reduction <add>, %21, %cst_14 [1] : vector<8x128xf32> to vector<8xf32>
      %23 = vector.shape_cast %22 : vector<8xf32> to vector<8x1xf32>
      %cst_15 = arith.constant 3.125000e-02 : f32
      %24 = vector.broadcast %cst_15 : f32 to vector<8x1xf32>
      %25 = arith.mulf %23, %24 : vector<8x1xf32>
      %26 = arith.mulf %21, %21 : vector<8x128xf32>
      %cst_16 = arith.constant dense<0.000000e+00> : vector<8xf32>
      %27 = vector.multi_reduction <add>, %26, %cst_16 [1] : vector<8x128xf32> to vector<8xf32>
      %28 = vector.shape_cast %27 : vector<8xf32> to vector<8x1xf32>
      %cst_17 = arith.constant 3.125000e-02 : f32
      %29 = vector.broadcast %cst_17 : f32 to vector<8x1xf32>
      %30 = arith.mulf %28, %29 : vector<8x1xf32>
      %31 = arith.mulf %25, %25 : vector<8x1xf32>
      %32 = arith.subf %30, %31 : vector<8x1xf32>
      %cst_18 = arith.constant 0.000000e+00 : f32
      %33 = vector.broadcast %cst_18 : f32 to vector<8x1xf32>
      %34 = arith.maximumf %32, %33 : vector<8x1xf32>
      %35 = vector.broadcast %25 : vector<8x1xf32> to vector<8x128xf32>
      %36 = arith.subf %21, %35 : vector<8x128xf32>
      %cst_19 = arith.constant 9.99999974E-6 : f32
      %37 = vector.broadcast %cst_19 : f32 to vector<8x1xf32>
      %38 = arith.addf %34, %37 : vector<8x1xf32>
      %39 = math.rsqrt %38 : vector<8x1xf32>
      %40 = vector.broadcast %39 : vector<8x1xf32> to vector<8x128xf32>
      %41 = arith.mulf %36, %40 : vector<8x128xf32>
      %c2 = arith.constant 2 : index
      %c0_20 = arith.constant 0 : index
      %42 = vector.load %arg5[%c2, %c0_20] : memref<8x128xf32, #tpu.memory_space<vmem>>, vector<1x128xf32>
      %43 = vector.broadcast %42 : vector<1x128xf32> to vector<8x128xf32>
      %44 = arith.mulf %41, %43 : vector<8x128xf32>
      %c3 = arith.constant 3 : index
      %c0_21 = arith.constant 0 : index
      %45 = vector.load %arg5[%c3, %c0_21] : memref<8x128xf32, #tpu.memory_space<vmem>>, vector<1x128xf32>
      %46 = vector.broadcast %45 : vector<1x128xf32> to vector<8x128xf32>
      %47 = arith.addf %44, %46 : vector<8x128xf32>
      %c0_22 = arith.constant 0 : index
      %c0_23 = arith.constant 0 : index
      %48 = vector.load %arg7[%c0_22, %c0_23] : memref<8x128xf32, #tpu.memory_space<vmem>>, vector<8x128xf32>
      tpu.vector_store %arg7[%c0_22, %c0_23], %47 {strides = array<i32>} : memref<8x128xf32, #tpu.memory_space<vmem>>, vector<8x128xf32>,
    } else {
    }
    %c128_i32 = arith.constant 128 : i32
    %3 = arith.muli %arg1, %c128_i32 : i32
    %4 = tpu.assume_multiple %3, 128 : i32
    %c0 = arith.constant 0 : index
    %c0_1 = arith.constant 0 : index
    %5 = vector.load %arg7[%c0, %c0_1] : memref<8x128xf32, #tpu.memory_space<vmem>>, vector<8x128xf32>
    %c0_2 = arith.constant 0 : index
    %c0_3 = arith.constant 0 : index
    %6 = vector.load %arg4[%c0_2, %c0_3] : memref<128x128xf32, #tpu.memory_space<vmem>>, vector<128x128xf32>
    %cst = arith.constant dense<0.000000e+00> : vector<8x128xf32>
    %7 = tpu.matmul %5, %6, %cst {dimension_numbers = #tpu.dot_dimension_numbers<[1], [0], [0], [1], [0, 0, 1, 1], [], []>} : vector<8x128xf32>, vector<128x128xf32>, vector<8x128xf32> -> vector<8x128xf32>
    %c1 = arith.constant 1 : index
    %8 = arith.index_cast %4 : i32 to index
    %9 = vector.load %arg5[%c1, %8] : memref<8x128xf32, #tpu.memory_space<vmem>>, vector<1x128xf32>
    %10 = vector.broadcast %9 : vector<1x128xf32> to vector<8x128xf32>
    %11 = arith.addf %7, %10 : vector<8x128xf32>
    %c0_4 = arith.constant 0 : index
    %12 = arith.index_cast %4 : i32 to index
    %13 = vector.load %arg7[%c0_4, %12] : memref<8x128xf32, #tpu.memory_space<vmem>>, vector<8x128xf32>
    %14 = arith.addf %11, %13 : vector<8x128xf32>
    %c0_5 = arith.constant 0 : index
    %c0_6 = arith.constant 0 : index
    %15 = vector.load %arg6[%c0_5, %c0_6] : memref<8x128xf32, #tpu.memory_space<vmem>>, vector<8x128xf32>
    tpu.vector_store %arg6[%c0_5, %c0_6], %14 {strides = array<i32>} : memref<8x128xf32, #tpu.memory_space<vmem>>, vector<8x128xf32>,
    return
  }
  func.func @transform_0(%arg0: i32, %arg1: i32) -> (i32, i32) {
    %c0_i32 = arith.constant 0 : i32
    %c0_i32_0 = arith.constant 0 : i32
    return %arg0, %c0_i32 : i32, i32
  }
  func.func @transform_1(%arg0: i32, %arg1: i32) -> (i32, i32) {
    %c0_i32 = arith.constant 0 : i32
    %c0_i32_0 = arith.constant 0 : i32
    %c0_i32_1 = arith.constant 0 : i32
    return %c0_i32, %c0_i32_0 : i32, i32
  }
  func.func @transform_2(%arg0: i32, %arg1: i32) -> (i32, i32) {
    %c0_i32 = arith.constant 0 : i32
    %c0_i32_0 = arith.constant 0 : i32
    return %c0_i32, %arg1 : i32, i32
  }
  func.func @transform_3(%arg0: i32, %arg1: i32) -> (i32, i32) {
    %c0_i32 = arith.constant 0 : i32
    %c0_i32_0 = arith.constant 0 : i32
    %c0_i32_1 = arith.constant 0 : i32
    return %c0_i32, %c0_i32_0 : i32, i32
  }
  func.func @transform_4(%arg0: i32, %arg1: i32) -> (i32, i32) {
    %c0_i32 = arith.constant 0 : i32
    return %arg0, %arg1 : i32, i32
  }
}

</mosaic_0001>

<llo_original>
// kernel: tpu_custom_call.1
$region0: #{tpu_custom_call.1}
  #allocation0 [shape = 'u32[]', space=smem, size = 0x4, offset = 0x4, fixed_abs, tag = 'smem constant byte address 0x4 - core index']
  #allocation1 [shape = 'u32[72,128]{1,0:T(1,128)}', space=vmem, size = 0x9000, scoped, tag = 'internal scratch']
  #allocation2 [shape = 'f32[8,128]{1,0:T(8,128)}', space=vmem, size = 0x1000, scoped, tag = 'scratch operand']
  %s0 = inlined_call_operand.hbm [shape: f32[8,128], index: 0, kind: input, shape index: {}]
  %s1 = inlined_call_operand.hbm [shape: f32[128,128], index: 1, kind: input, shape index: {}]
  %s2 = inlined_call_operand.hbm [shape: f32[128,128], index: 2, kind: input, shape index: {}]
  %s3 = inlined_call_operand.hbm [shape: f32[8,128], index: 3, kind: input, shape index: {}]
  %s4 = inlined_call_operand.hbm [shape: f32[8,128], index: 4, kind: output, shape index: {}]
  %s5 = sld [smem:[#allocation0]]
  $region46: #{tpu_custom_call.1} parent=0
    _
  %s7 = ssub.s32 1, %s5
  %s8 = scalar_select 0, %s7, %s5
  $region1: #{tpu_custom_call.1} parent=0
    #allocation3 [shape = 'u8[4096]{0}', space=vmem, size = 0x1000, scoped, tag = 'input window, operand 0, single buffered']
    #allocation4 [shape = 's32[1]{0}', space=sflag, size = 0x4, scoped, tag = 'scoped memory for tpu_custom_call.1']
    #allocation5 [shape = 's32[1]{0}', space=sflag, size = 0x4, scoped, tag = 'scoped memory for tpu_custom_call.1']
    #allocation6 [shape = 'u8[65536]{0}', space=vmem, size = 0x10000, scoped, tag = 'input window, operand 1, single buffered']
    #allocation7 [shape = 's32[1]{0}', space=sflag, size = 0x4, scoped, tag = 'scoped memory for tpu_custom_call.1']
    #allocation8 [shape = 'u8[65536]{0}', space=vmem, size = 0x10000, scoped, tag = 'input window, operand 2, single buffered']
    #allocation9 [shape = 'u8[4096]{0}', space=vmem, size = 0x1000, scoped, tag = 'input window, operand 3, single buffered']
    #allocation10 [shape = 's32[1]{0}', space=sflag, size = 0x4, scoped, tag = 'scoped memory for tpu_custom_call.1']
    #allocation11 [shape = 'u8[4096]{0}', space=vmem, size = 0x1000, scoped, tag = 'output window, operand 0, single buffered']
    %9 = vsyncpa [#allocation4], 0
    %10 = vsyncpa [#allocation7], 0
    %11 = vsyncpa [#allocation10], 0
    %12 = vsyncpa [#allocation5], 0
    // Predicated region
    $region2: #{tpu_custom_call.1} parent=1 // pred_check
      _
    $region3: #{tpu_custom_call.1} parent=1 // pred_check_branch
      %14 = sbr.rel (0) target = $region5
    $region4: #{tpu_custom_call.1} parent=1 // pred_region
      %16 = vsyncadd [#allocation4], 0
      %s18 = sshll.u32 %s0, 4
      %s19 = int_to_ptr.hbm [resolvable:$true] %s18
      %s20 = sshll.u32 [#allocation3], 4
      %s21 = int_to_ptr.vmem [resolvable:$true] %s20
      %23 = dma.hbm_to_vmem [thread:$0]  %s19, 128, %s21, [#allocation4]
    $region5: #{tpu_custom_call.1} parent=1 // pred_fallthru
      _
    // Predicated region
    $region6: #{tpu_custom_call.1} parent=1 // pred_check
      _
    $region7: #{tpu_custom_call.1} parent=1 // pred_check_branch
      %25 = sbr.rel (0) target = $region9
    $region8: #{tpu_custom_call.1} parent=1 // pred_region
      %27 = vsyncadd [#allocation7], 0
      %s28 = sshll.u32 %s1, 4
      %s29 = int_to_ptr.hbm [resolvable:$true] %s28
      %s30 = sshll.u32 [#allocation6], 4
      %s31 = int_to_ptr.vmem [resolvable:$true] %s30
      %36 = dma.hbm_to_vmem [thread:$0]  %s29, 2048, %s31, [#allocation7], 128, 128, 8
    $region9: #{tpu_custom_call.1} parent=1 // pred_fallthru
      _
    // Predicated region
    $region10: #{tpu_custom_call.1} parent=1 // pred_check
      _
    $region11: #{tpu_custom_call.1} parent=1 // pred_check_branch
      %38 = sbr.rel (0) target = $region13
    $region12: #{tpu_custom_call.1} parent=1 // pred_region
      %40 = vsyncadd [#allocation7], 0
      %s41 = sshll.u32 %s2, 4
      %s42 = int_to_ptr.hbm [resolvable:$true] %s41
      %s43 = sshll.u32 [#allocation8], 4
      %s44 = int_to_ptr.vmem [resolvable:$true] %s43
      %49 = dma.hbm_to_vmem [thread:$0]  %s42, 2048, %s44, [#allocation7], 128, 128, 8
    $region13: #{tpu_custom_call.1} parent=1 // pred_fallthru
      _
    // Predicated region
    $region14: #{tpu_custom_call.1} parent=1 // pred_check
      _
    $region15: #{tpu_custom_call.1} parent=1 // pred_check_branch
      %51 = sbr.rel (0) target = $region17
    $region16: #{tpu_custom_call.1} parent=1 // pred_region
      %53 = vsyncadd [#allocation10], 0
      %s55 = sshll.u32 %s3, 4
      %s56 = int_to_ptr.hbm [resolvable:$true] %s55
      %s57 = sshll.u32 [#allocation9], 4
      %s58 = int_to_ptr.vmem [resolvable:$true] %s57
      %60 = dma.hbm_to_vmem [thread:$0]  %s56, 128, %s58, [#allocation10]
    $region17: #{tpu_custom_call.1} parent=1 // pred_fallthru
      _
    // Predicated region
    $region18: #{tpu_custom_call.1} parent=1 // pred_check
      _
    $region19: #{tpu_custom_call.1} parent=1 // pred_check_branch
      %62 = sbr.rel (0) target = $region21
    $region20: #{tpu_custom_call.1} parent=1 // pred_region
      %64 = dma.done [#allocation4], 128
    $region21: #{tpu_custom_call.1} parent=1 // pred_fallthru
      _
    // Predicated region
    $region22: #{tpu_custom_call.1} parent=1 // pred_check
      _
    $region23: #{tpu_custom_call.1} parent=1 // pred_check_branch
      %66 = sbr.rel (0) target = $region25
    $region24: #{tpu_custom_call.1} parent=1 // pred_region
      %68 = dma.done [#allocation7], 2048
    $region25: #{tpu_custom_call.1} parent=1 // pred_fallthru
      _
    // Predicated region
    $region26: #{tpu_custom_call.1} parent=1 // pred_check
      _
    $region27: #{tpu_custom_call.1} parent=1 // pred_check_branch
      %70 = sbr.rel (0) target = $region29
    $region28: #{tpu_custom_call.1} parent=1 // pred_region
      %72 = dma.done [#allocation7], 2048
    $region29: #{tpu_custom_call.1} parent=1 // pred_fallthru
      _
    // Predicated region
    $region30: #{tpu_custom_call.1} parent=1 // pred_check
      _
    $region31: #{tpu_custom_call.1} parent=1 // pred_check_branch
      %74 = sbr.rel (0) target = $region33
    $region32: #{tpu_custom_call.1} parent=1 // pred_region
      %76 = dma.done [#allocation10], 128
    $region33: #{tpu_custom_call.1} parent=1 // pred_fallthru
      _
    %p77 = scmp.eq.s32.totalorder 0, 0
    // Predicated region
    $region34: #{tpu_custom_call.1} parent=1 // pred_check
      %p78 = pneg %p77
    $region35: #{tpu_custom_call.1} parent=1 // pred_check_branch
      %80 = sbr.rel (%p78) target = $region37
    $region36: #{tpu_custom_call.1} parent=1 // pred_region
      %v81 = vld [vmem:[#allocation3] sm:$0xff]
      %v82 = vld [vmem:[#allocation6] sm:$0xff]
      %v83 = vld [vmem:[#allocation6 + $0x8] sm:$0xff]
      %v84 = vld [vmem:[#allocation6 + $0x10] sm:$0xff]
      %v85 = vld [vmem:[#allocation6 + $0x18] sm:$0xff]
      %v86 = vld [vmem:[#allocation6 + $0x20] sm:$0xff]
      %v87 = vld [vmem:[#allocation6 + $0x28] sm:$0xff]
      %v88 = vld [vmem:[#allocation6 + $0x30] sm:$0xff]
      %v89 = vld [vmem:[#allocation6 + $0x38] sm:$0xff]
      %v90 = vld [vmem:[#allocation6 + $0x40] sm:$0xff]
      %v91 = vld [vmem:[#allocation6 + $0x48] sm:$0xff]
      %v92 = vld [vmem:[#allocation6 + $0x50] sm:$0xff]
      %v93 = vld [vmem:[#allocation6 + $0x58] sm:$0xff]
      %v94 = vld [vmem:[#allocation6 + $0x60] sm:$0xff]
      %v95 = vld [vmem:[#allocation6 + $0x68] sm:$0xff]
      %v96 = vld [vmem:[#allocation6 + $0x70] sm:$0xff]
      %v97 = vld [vmem:[#allocation6 + $0x78] sm:$0xff]
      %v98 = vld [vmem:[#allocation9] sm:$0x1]
      %v99 = vperm.slane %v98, 0
      %100 = vmatpush.msra.mxu0 %v97
      %101 = vmatpush.msra.mxu0 %v96
      %102 = vmatpush.msra.mxu0 %v95
      %103 = vmatpush.msra.mxu0 %v94
      %104 = vmatpush.msra.mxu0 %v93
      %105 = vmatpush.msra.mxu0 %v92
      %106 = vmatpush.msra.mxu0 %v91
      %107 = vmatpush.msra.mxu0 %v90
      %108 = vmatpush.msra.mxu0 %v89
      %109 = vmatpush.msra.mxu0 %v88
      %110 = vmatpush.msra.mxu0 %v87
      %111 = vmatpush.msra.mxu0 %v86
      %112 = vmatpush.msra.mxu0 %v85
      %113 = vmatpush.msra.mxu0 %v84
      %114 = vmatpush.msra.mxu0 %v83
      %115 = vmatpush.msra.mxu0 %v82
      %116 = vmatmul.f32.gmra.mxu0 %v81
      %v117 = vpop.f32.mrf.mxu0
      %v118 = vadd.f32 %v99, %v117
      %119 = vdwg.mxu0
      %120 = vadd.xlane.f32.xlu0 %v118
      %v121 = vpop.xlane.xlu0 %120
      %v122 = vmul.f32 %v121, 0.03125
      %v123 = vmul.f32 %v118, %v118
      %124 = vadd.xlane.f32.xlu0 %v123
      %v125 = vpop.xlane.xlu0 %124
      %v126 = vmul.f32 %v125, 0.03125
      %v127 = vmul.f32 %v122, %v122
      %v128 = vsub.f32 %v126, %v127
      %v129 = vmax.f32 %v128, 0.0
      %v130 = vsub.f32 %v118, %v122
      %v131 = vadd.f32 %v129, 1e-05
      %v132 = vrsqrt.pop %v131
      %v133 = vmul.f32 %v132, %v131
      %v134 = vmul.f32 %v133, %v132
      %v135 = vmul.f32 0.5, %v134
      %v136 = vsub.f32 1.5, %v135
      %v137 = vmul.f32 %v132, %v136
      %vm138 = vweird.f32 %v131
      %vm139 = vweird.f32 %v132
      %vm140 = vmor %vm138, %vm139
      %v141 = vsel %vm140, %v132, %v137
      %v142 = vmul.f32 %v130, %v141
      %v143 = vld [vmem:[#allocation9 + $0x2] sm:$0x1]
      %v144 = vperm.slane %v143, 0
      %v145 = vmul.f32 %v142, %v144
      %v146 = vld [vmem:[#allocation9 + $0x3] sm:$0x1]
      %v147 = vperm.slane %v146, 0
      %v148 = vadd.f32 %v145, %v147
      %149 = vst [vmem:[#allocation2] sm:$0xff] %v148
    $region37: #{tpu_custom_call.1} parent=1 // pred_fallthru
      _
    %s150 = smul.u32 0, 128
    %v151 = vld [vmem:[#allocation2] sm:$0xff]
    %v152 = vld [vmem:[#allocation8] sm:$0xff]
    %v153 = vld [vmem:[#allocation8 + $0x8] sm:$0xff]
    %v154 = vld [vmem:[#allocation8 + $0x10] sm:$0xff]
    %v155 = vld [vmem:[#allocation8 + $0x18] sm:$0xff]
    %v156 = vld [vmem:[#allocation8 + $0x20] sm:$0xff]
    %v157 = vld [vmem:[#allocation8 + $0x28] sm:$0xff]
    %v158 = vld [vmem:[#allocation8 + $0x30] sm:$0xff]
    %v159 = vld [vmem:[#allocation8 + $0x38] sm:$0xff]
    %v160 = vld [vmem:[#allocation8 + $0x40] sm:$0xff]
    %v161 = vld [vmem:[#allocation8 + $0x48] sm:$0xff]
    %v162 = vld [vmem:[#allocation8 + $0x50] sm:$0xff]
    %v163 = vld [vmem:[#allocation8 + $0x58] sm:$0xff]
    %v164 = vld [vmem:[#allocation8 + $0x60] sm:$0xff]
    %v165 = vld [vmem:[#allocation8 + $0x68] sm:$0xff]
    %v166 = vld [vmem:[#allocation8 + $0x70] sm:$0xff]
    %v167 = vld [vmem:[#allocation8 + $0x78] sm:$0xff]
    %s168 = sshra.s32 %s150, 7
    %s169 = sand.u32 %s150, 127
    %s170 = scalar_lea.vmem [#allocation9], %s168
    %v171 = vld [vmem:[%s170 + $0x1] sm:$0x1]
    %v172 = vperm.slane %v171, 0
    %173 = vmatpush.msra.mxu0 %v167
    %174 = vmatpush.msra.mxu0 %v166
    %175 = vmatpush.msra.mxu0 %v165
    %176 = vmatpush.msra.mxu0 %v164
    %177 = vmatpush.msra.mxu0 %v163
    %178 = vmatpush.msra.mxu0 %v162
    %179 = vmatpush.msra.mxu0 %v161
    %180 = vmatpush.msra.mxu0 %v160
    %181 = vmatpush.msra.mxu0 %v159
    %182 = vmatpush.msra.mxu0 %v158
    %183 = vmatpush.msra.mxu0 %v157
    %184 = vmatpush.msra.mxu0 %v156
    %185 = vmatpush.msra.mxu0 %v155
    %186 = vmatpush.msra.mxu0 %v154
    %187 = vmatpush.msra.mxu0 %v153
    %188 = vmatpush.msra.mxu0 %v152
    %189 = vmatmul.f32.gmra.mxu0 %v151
    %v190 = vpop.f32.mrf.mxu0
    %v191 = vadd.f32 %v172, %v190
    %192 = vdwg.mxu0
    %s193 = scalar_lea.vmem [#allocation2], %s168
    %v194 = vld [vmem:[%s193] sm:$0xff]
    %v195 = vadd.f32 %v191, %v194
    %196 = vst [vmem:[#allocation11] sm:$0xff] %v195
    // Predicated region
    $region38: #{tpu_custom_call.1} parent=1 // pred_check
      _
    $region39: #{tpu_custom_call.1} parent=1 // pred_check_branch
      %198 = sbr.rel (0) target = $region41
    $region40: #{tpu_custom_call.1} parent=1 // pred_region
      %200 = vsyncadd [#allocation5], 0
      %s202 = sshll.u32 [#allocation11], 4
      %s203 = int_to_ptr.vmem [resolvable:$true] %s202
      %s204 = sshll.u32 %s4, 4
      %s205 = int_to_ptr.hbm [resolvable:$true] %s204
      %207 = dma.vmem_to_hbm [thread:$0]  %s203, 128, %s205, [#allocation5]
    $region41: #{tpu_custom_call.1} parent=1 // pred_fallthru
      _
    // Predicated region
    $region42: #{tpu_custom_call.1} parent=1 // pred_check
      _
    $region43: #{tpu_custom_call.1} parent=1 // pred_check_branch
      %209 = sbr.rel (0) target = $region45
    $region44: #{tpu_custom_call.1} parent=1 // pred_region
      %211 = dma.done [#allocation5], 128
    $region45: #{tpu_custom_call.1} parent=1 // pred_fallthru
      _
    %212 = vsyncpa [#allocation4], 1
    %213 = vsyncpa [#allocation7], 1
    %214 = vsyncpa [#allocation10], 1
    %215 = vsyncpa [#allocation5], 1

// kernel: tpu_custom_call.1
$region0: #{tpu_custom_call.1}
  #allocation0 [shape = 'u32[]', space=smem, size = 0x4, offset = 0x4, fixed_abs, tag = 'smem constant byte address 0x4 - core index']
  #allocation1 [shape = 'u32[72,128]{1,0:T(1,128)}', space=vmem, size = 0x9000, scoped, tag = 'internal scratch']
  #allocation2 [shape = 'f32[8,128]{1,0:T(8,128)}', space=vmem, size = 0x1000, scoped, tag = 'scratch operand']
  %s0 = inlined_call_operand.hbm [shape: f32[8,128], index: 0, kind: input, shape index: {}]
  %s1 = inlined_call_operand.hbm [shape: f32[128,128], index: 1, kind: input, shape index: {}]
  %s2 = inlined_call_operand.hbm [shape: f32[128,128], index: 2, kind: input, shape index: {}]
  %s3 = inlined_call_operand.hbm [shape: f32[8,128], index: 3, kind: input, shape index: {}]
  %s4 = inlined_call_operand.hbm [shape: f32[8,128], index: 4, kind: output, shape index: {}]
  %s5 = sld [smem:[#allocation0]]
  $region46: #{tpu_custom_call.1} parent=0
    _
  %s7 = ssub.s32 1, %s5
  %s8 = scalar_select 0, %s7, %s5
  $region1: #{tpu_custom_call.1} parent=0
    #allocation3 [shape = 'u8[4096]{0}', space=vmem, size = 0x1000, scoped, tag = 'input window, operand 0, single buffered']
    #allocation4 [shape = 's32[1]{0}', space=sflag, size = 0x4, scoped, tag = 'scoped memory for tpu_custom_call.1']
    #allocation5 [shape = 's32[1]{0}', space=sflag, size = 0x4, scoped, tag = 'scoped memory for tpu_custom_call.1']
    #allocation6 [shape = 'u8[65536]{0}', space=vmem, size = 0x10000, scoped, tag = 'input window, operand 1, single buffered']
    #allocation7 [shape = 's32[1]{0}', space=sflag, size = 0x4, scoped, tag = 'scoped memory for tpu_custom_call.1']
    #allocation8 [shape = 'u8[65536]{0}', space=vmem, size = 0x10000, scoped, tag = 'input window, operand 2, single buffered']
    #allocation9 [shape = 'u8[4096]{0}', space=vmem, size = 0x1000, scoped, tag = 'input window, operand 3, single buffered']
    #allocation10 [shape = 's32[1]{0}', space=sflag, size = 0x4, scoped, tag = 'scoped memory for tpu_custom_call.1']
    #allocation11 [shape = 'u8[4096]{0}', space=vmem, size = 0x1000, scoped, tag = 'output window, operand 0, single buffered']
    %9 = vsyncpa [#allocation4], 0
    %10 = vsyncpa [#allocation7], 0
    %11 = vsyncpa [#allocation10], 0
    %12 = vsyncpa [#allocation5], 0
    // Predicated region
    $region2: #{tpu_custom_call.1} parent=1 // pred_check
      _
    $region3: #{tpu_custom_call.1} parent=1 // pred_check_branch
      %14 = sbr.rel (0) target = $region5
    $region4: #{tpu_custom_call.1} parent=1 // pred_region
      %16 = vsyncadd [#allocation4], 0
      %s18 = sshll.u32 %s0, 4
      %s19 = int_to_ptr.hbm [resolvable:$true] %s18
      %s20 = sshll.u32 [#allocation3], 4
      %s21 = int_to_ptr.vmem [resolvable:$true] %s20
      %23 = dma.hbm_to_vmem [thread:$0]  %s19, 128, %s21, [#allocation4]
    $region5: #{tpu_custom_call.1} parent=1 // pred_fallthru
      _
    // Predicated region
    $region6: #{tpu_custom_call.1} parent=1 // pred_check
      _
    $region7: #{tpu_custom_call.1} parent=1 // pred_check_branch
      %25 = sbr.rel (0) target = $region9
    $region8: #{tpu_custom_call.1} parent=1 // pred_region
      %27 = vsyncadd [#allocation7], 0
      %s28 = sshll.u32 %s1, 4
      %s29 = int_to_ptr.hbm [resolvable:$true] %s28
      %s30 = sshll.u32 [#allocation6], 4
      %s31 = int_to_ptr.vmem [resolvable:$true] %s30
      %36 = dma.hbm_to_vmem [thread:$0]  %s29, 2048, %s31, [#allocation7], 128, 128, 8
    $region9: #{tpu_custom_call.1} parent=1 // pred_fallthru
      _
    // Predicated region
    $region10: #{tpu_custom_call.1} parent=1 // pred_check
      _
    $region11: #{tpu_custom_call.1} parent=1 // pred_check_branch
      %38 = sbr.rel (0) target = $region13
    $region12: #{tpu_custom_call.1} parent=1 // pred_region
      %40 = vsyncadd [#allocation7], 0
      %s41 = sshll.u32 %s2, 4
      %s42 = int_to_ptr.hbm [resolvable:$true] %s41
      %s43 = sshll.u32 [#allocation8], 4
      %s44 = int_to_ptr.vmem [resolvable:$true] %s43
      %49 = dma.hbm_to_vmem [thread:$0]  %s42, 2048, %s44, [#allocation7], 128, 128, 8
    $region13: #{tpu_custom_call.1} parent=1 // pred_fallthru
      _
    // Predicated region
    $region14: #{tpu_custom_call.1} parent=1 // pred_check
      _
    $region15: #{tpu_custom_call.1} parent=1 // pred_check_branch
      %51 = sbr.rel (0) target = $region17
    $region16: #{tpu_custom_call.1} parent=1 // pred_region
      %53 = vsyncadd [#allocation10], 0
      %s55 = sshll.u32 %s3, 4
      %s56 = int_to_ptr.hbm [resolvable:$true] %s55
      %s57 = sshll.u32 [#allocation9], 4
      %s58 = int_to_ptr.vmem [resolvable:$true] %s57
      %60 = dma.hbm_to_vmem [thread:$0]  %s56, 128, %s58, [#allocation10]
    $region17: #{tpu_custom_call.1} parent=1 // pred_fallthru
      _
    // Predicated region
    $region18: #{tpu_custom_call.1} parent=1 // pred_check
      _
    $region19: #{tpu_custom_call.1} parent=1 // pred_check_branch
      %62 = sbr.rel (0) target = $region21
    $region20: #{tpu_custom_call.1} parent=1 // pred_region
      %64 = dma.done [#allocation4], 128
    $region21: #{tpu_custom_call.1} parent=1 // pred_fallthru
      _
    // Predicated region
    $region22: #{tpu_custom_call.1} parent=1 // pred_check
      _
    $region23: #{tpu_custom_call.1} parent=1 // pred_check_branch
      %66 = sbr.rel (0) target = $region25
    $region24: #{tpu_custom_call.1} parent=1 // pred_region
      %68 = dma.done [#allocation7], 2048
    $region25: #{tpu_custom_call.1} parent=1 // pred_fallthru
      _
    // Predicated region
    $region26: #{tpu_custom_call.1} parent=1 // pred_check
      _
    $region27: #{tpu_custom_call.1} parent=1 // pred_check_branch
      %70 = sbr.rel (0) target = $region29
    $region28: #{tpu_custom_call.1} parent=1 // pred_region
      %72 = dma.done [#allocation7], 2048
    $region29: #{tpu_custom_call.1} parent=1 // pred_fallthru
      _
    // Predicated region
    $region30: #{tpu_custom_call.1} parent=1 // pred_check
      _
    $region31: #{tpu_custom_call.1} parent=1 // pred_check_branch
      %74 = sbr.rel (0) target = $region33
    $region32: #{tpu_custom_call.1} parent=1 // pred_region
      %76 = dma.done [#allocation10], 128
    $region33: #{tpu_custom_call.1} parent=1 // pred_fallthru
      _
    %p77 = scmp.eq.s32.totalorder 0, 0
    // Predicated region
    $region34: #{tpu_custom_call.1} parent=1 // pred_check
      %p78 = pneg %p77
    $region35: #{tpu_custom_call.1} parent=1 // pred_check_branch
      %80 = sbr.rel (%p78) target = $region37
    $region36: #{tpu_custom_call.1} parent=1 // pred_region
      %v81 = vld [vmem:[#allocation3] sm:$0xff]
      %v82 = vld [vmem:[#allocation6] sm:$0xff]
      %v83 = vld [vmem:[#allocation6 + $0x8] sm:$0xff]
      %v84 = vld [vmem:[#allocation6 + $0x10] sm:$0xff]
      %v85 = vld [vmem:[#allocation6 + $0x18] sm:$0xff]
      %v86 = vld [vmem:[#allocation6 + $0x20] sm:$0xff]
      %v87 = vld [vmem:[#allocation6 + $0x28] sm:$0xff]
      %v88 = vld [vmem:[#allocation6 + $0x30] sm:$0xff]
      %v89 = vld [vmem:[#allocation6 + $0x38] sm:$0xff]
      %v90 = vld [vmem:[#allocation6 + $0x40] sm:$0xff]
      %v91 = vld [vmem:[#allocation6 + $0x48] sm:$0xff]
      %v92 = vld [vmem:[#allocation6 + $0x50] sm:$0xff]
      %v93 = vld [vmem:[#allocation6 + $0x58] sm:$0xff]
      %v94 = vld [vmem:[#allocation6 + $0x60] sm:$0xff]
      %v95 = vld [vmem:[#allocation6 + $0x68] sm:$0xff]
      %v96 = vld [vmem:[#allocation6 + $0x70] sm:$0xff]
      %v97 = vld [vmem:[#allocation6 + $0x78] sm:$0xff]
      %v98 = vld [vmem:[#allocation9] sm:$0x1]
      %v99 = vperm.slane %v98, 0
      %100 = vmatpush.msra.mxu0 %v97
      %101 = vmatpush.msra.mxu0 %v96
      %102 = vmatpush.msra.mxu0 %v95
      %103 = vmatpush.msra.mxu0 %v94
      %104 = vmatpush.msra.mxu0 %v93
      %105 = vmatpush.msra.mxu0 %v92
      %106 = vmatpush.msra.mxu0 %v91
      %107 = vmatpush.msra.mxu0 %v90
      %108 = vmatpush.msra.mxu0 %v89
      %109 = vmatpush.msra.mxu0 %v88
      %110 = vmatpush.msra.mxu0 %v87
      %111 = vmatpush.msra.mxu0 %v86
      %112 = vmatpush.msra.mxu0 %v85
      %113 = vmatpush.msra.mxu0 %v84
      %114 = vmatpush.msra.mxu0 %v83
      %115 = vmatpush.msra.mxu0 %v82
      %116 = vmatmul.f32.gmra.mxu0 %v81
      %v117 = vpop.f32.mrf.mxu0
      %v118 = vadd.f32 %v99, %v117
      %119 = vdwg.mxu0
      %120 = vadd.xlane.f32.xlu0 %v118
      %v121 = vpop.xlane.xlu0 %120
      %v122 = vmul.f32 %v121, 0.03125
      %v123 = vmul.f32 %v118, %v118
      %124 = vadd.xlane.f32.xlu0 %v123
      %v125 = vpop.xlane.xlu0 %124
      %v126 = vmul.f32 %v125, 0.03125
      %v127 = vmul.f32 %v122, %v122
      %v128 = vsub.f32 %v126, %v127
      %v129 = vmax.f32 %v128, 0.0
      %v130 = vsub.f32 %v118, %v122
      %v131 = vadd.f32 %v129, 1e-05
      %v132 = vrsqrt.pop %v131
      %v133 = vmul.f32 %v132, %v131
      %v134 = vmul.f32 %v133, %v132
      %v135 = vmul.f32 0.5, %v134
      %v136 = vsub.f32 1.5, %v135
      %v137 = vmul.f32 %v132, %v136
      %vm138 = vweird.f32 %v131
      %vm139 = vweird.f32 %v132
      %vm140 = vmor %vm138, %vm139
      %v141 = vsel %vm140, %v132, %v137
      %v142 = vmul.f32 %v130, %v141
      %v143 = vld [vmem:[#allocation9 + $0x2] sm:$0x1]
      %v144 = vperm.slane %v143, 0
      %v145 = vmul.f32 %v142, %v144
      %v146 = vld [vmem:[#allocation9 + $0x3] sm:$0x1]
      %v147 = vperm.slane %v146, 0
      %v148 = vadd.f32 %v145, %v147
      %149 = vst [vmem:[#allocation2] sm:$0xff] %v148
    $region37: #{tpu_custom_call.1} parent=1 // pred_fallthru
      _
    %s150 = smul.u32 0, 128
    %v151 = vld [vmem:[#allocation2] sm:$0xff]
    %v152 = vld [vmem:[#allocation8] sm:$0xff]
    %v153 = vld [vmem:[#allocation8 + $0x8] sm:$0xff]
    %v154 = vld [vmem:[#allocation8 + $0x10] sm:$0xff]
    %v155 = vld [vmem:[#allocation8 + $0x18] sm:$0xff]
    %v156 = vld [vmem:[#allocation8 + $0x20] sm:$0xff]
    %v157 = vld [vmem:[#allocation8 + $0x28] sm:$0xff]
    %v158 = vld [vmem:[#allocation8 + $0x30] sm:$0xff]
    %v159 = vld [vmem:[#allocation8 + $0x38] sm:$0xff]
    %v160 = vld [vmem:[#allocation8 + $0x40] sm:$0xff]
    %v161 = vld [vmem:[#allocation8 + $0x48] sm:$0xff]
    %v162 = vld [vmem:[#allocation8 + $0x50] sm:$0xff]
    %v163 = vld [vmem:[#allocation8 + $0x58] sm:$0xff]
    %v164 = vld [vmem:[#allocation8 + $0x60] sm:$0xff]
    %v165 = vld [vmem:[#allocation8 + $0x68] sm:$0xff]
    %v166 = vld [vmem:[#allocation8 + $0x70] sm:$0xff]
    %v167 = vld [vmem:[#allocation8 + $0x78] sm:$0xff]
    %s168 = sshra.s32 %s150, 7
    %s169 = sand.u32 %s150, 127
    %s170 = scalar_lea.vmem [#allocation9], %s168
    %v171 = vld [vmem:[%s170 + $0x1] sm:$0x1]
    %v172 = vperm.slane %v171, 0
    %173 = vmatpush.msra.mxu0 %v167
    %174 = vmatpush.msra.mxu0 %v166
    %175 = vmatpush.msra.mxu0 %v165
    %176 = vmatpush.msra.mxu0 %v164
    %177 = vmatpush.msra.mxu0 %v163
    %178 = vmatpush.msra.mxu0 %v162
    %179 = vmatpush.msra.mxu0 %v161
    %180 = vmatpush.msra.mxu0 %v160
    %181 = vmatpush.msra.mxu0 %v159
    %182 = vmatpush.msra.mxu0 %v158
    %183 = vmatpush.msra.mxu0 %v157
    %184 = vmatpush.msra.mxu0 %v156
    %185 = vmatpush.msra.mxu0 %v155
    %186 = vmatpush.msra.mxu0 %v154
    %187 = vmatpush.msra.mxu0 %v153
    %188 = vmatpush.msra.mxu0 %v152
    %189 = vmatmul.f32.gmra.mxu0 %v151
    %v190 = vpop.f32.mrf.mxu0
    %v191 = vadd.f32 %v172, %v190
    %192 = vdwg.mxu0
    %s193 = scalar_lea.vmem [#allocation2], %s168
    %v194 = vld [vmem:[%s193] sm:$0xff]
    %v195 = vadd.f32 %v191, %v194
    %196 = vst [vmem:[#allocation11] sm:$0xff] %v195
    // Predicated region
    $region38: #{tpu_custom_call.1} parent=1 // pred_check
      _
    $region39: #{tpu_custom_call.1} parent=1 // pred_check_branch
      %198 = sbr.rel (0) target = $region41
    $region40: #{tpu_custom_call.1} parent=1 // pred_region
      %200 = vsyncadd [#allocation5], 0
      %s202 = sshll.u32 [#allocation11], 4
      %s203 = int_to_ptr.vmem [resolvable:$true] %s202
      %s204 = sshll.u32 %s4, 4
      %s205 = int_to_ptr.hbm [resolvable:$true] %s204
      %207 = dma.vmem_to_hbm [thread:$0]  %s203, 128, %s205, [#allocation5]
    $region41: #{tpu_custom_call.1} parent=1 // pred_fallthru
      _
    // Predicated region
    $region42: #{tpu_custom_call.1} parent=1 // pred_check
      _
    $region43: #{tpu_custom_call.1} parent=1 // pred_check_branch
      %209 = sbr.rel (0) target = $region45
    $region44: #{tpu_custom_call.1} parent=1 // pred_region
      %211 = dma.done [#allocation5], 128
    $region45: #{tpu_custom_call.1} parent=1 // pred_fallthru
      _
    %212 = vsyncpa [#allocation4], 1
    %213 = vsyncpa [#allocation7], 1
    %214 = vsyncpa [#allocation10], 1
    %215 = vsyncpa [#allocation5], 1

</llo_original>
